<compile_context>
chip_gen: v5e
topology: v5e:2x2
jax: 0.10.0
libtpu: 0.0.40
codegen_flags: <defaults>
</compile_context>

<pallas_src>
import jax
import jax.numpy as jnp
from jax import lax
from jax.experimental import pallas as pl
from jax.experimental.pallas import tpu as pltpu

HIDDEN = 256
LN_EPS = 1e-5


def _round_up(x, m):
    return (x + m - 1) // m * m


def projection_head_kernel(x_ref, w1_ref, b1_ref, w2_ref, b2_ref,
                           gamma_ref, beta_ref, o_ref):
    # projection: (TM, D) @ (D, 256) on the MXU, f32 accumulate, f32 bias add.
    projected = jnp.dot(x_ref[...], w1_ref[...],
                        preferred_element_type=jnp.float32) + b1_ref[...]

    # exact GELU (erf formulation == nn.GELU() default)
    inv_sqrt2 = jnp.float32(0.7071067811865476)
    h = 0.5 * projected * (1.0 + lax.erf(projected * inv_sqrt2))

    # fc: (TM, 256) @ (256, 256); feed the MXU in the weights' native dtype.
    y = jnp.dot(h.astype(w2_ref.dtype), w2_ref[...],
                preferred_element_type=jnp.float32) + b2_ref[...]

    # TODO(synk): Dropout(p=0.1) implemented as inference-mode identity
    # (training-mode masking would need pltpu.prng_* + 1/(1-p) rescale).

    # residual
    y = y + projected

    # LayerNorm over last dim: one-pass stats (biased var), eps=1e-5, affine.
    inv_n = jnp.float32(1.0 / HIDDEN)
    s1 = jnp.sum(y, axis=-1, keepdims=True)
    s2 = jnp.sum(y * y, axis=-1, keepdims=True)
    mean = s1 * inv_n
    var = s2 * inv_n - mean * mean
    yhat = (y - mean) * lax.rsqrt(var + jnp.float32(LN_EPS))
    o_ref[...] = (yhat * gamma_ref[...] + beta_ref[...]).astype(o_ref.dtype)


def projection_head(x, w1, b1, w2, b2, gamma, beta, *, tm=256, out_dtype=None):
    """x: (B, D).  w1: (D, 256), w2: (256, 256) pre-transposed to (in, out).
    b1, b2, gamma, beta: (1, 256) float32.

    tm=256 is a good default on v6e/v7x; prefer tm=128 on v5e."""
    B, D = x.shape
    if out_dtype is None:
        out_dtype = x.dtype

    # Sublane granularity: 16 rows for 2-byte dtypes (bf16), 8 for 4-byte.
    sub = 16 if jnp.dtype(x.dtype).itemsize == 2 else 8

    tm_eff = min(tm, _round_up(B, sub))
    b_pad = _round_up(B, tm_eff)
    # Keep >=2 grid steps when the batch allows it so the "parallel" batch
    # axis can shard across v7x's two TensorCores.
    if b_pad // tm_eff < 2 and b_pad >= 2 * sub:
        tm_eff = _round_up(-(-b_pad // 2), sub)
        b_pad = _round_up(B, tm_eff)
    if b_pad != B:
        x = jnp.pad(x, ((0, b_pad - B), (0, 0)))

    grid = (b_pad // tm_eff,)
    const2d = lambda a: pl.BlockSpec(a.shape, lambda i: (0, 0))

    in_bytes = jnp.dtype(x.dtype).itemsize
    out_bytes = jnp.dtype(out_dtype).itemsize
    # VMEM budget: double-buffered x/out tiles + (double-buffered) constants,
    # with 2x headroom for the f32 epilogue temporaries.  Capped below v7x's
    # 64 MiB physical VMEM.
    vmem_needed = (
        2 * tm_eff * D * in_bytes
        + 2 * tm_eff * HIDDEN * out_bytes
        + 2 * (w1.nbytes + w2.nbytes + b1.nbytes + b2.nbytes
               + gamma.nbytes + beta.nbytes)
    )
    vmem_limit = int(min(max(2 * vmem_needed, 32 * 1024 * 1024),
                         56 * 1024 * 1024))

    cost = pl.CostEstimate(
        flops=2 * b_pad * D * HIDDEN + 2 * b_pad * HIDDEN * HIDDEN,
        transcendentals=b_pad * HIDDEN,  # erf in the GELU
        bytes_accessed=(x.nbytes + w1.nbytes + b1.nbytes + w2.nbytes
                        + b2.nbytes + gamma.nbytes + beta.nbytes
                        + b_pad * HIDDEN * out_bytes),
    )

    out = pl.pallas_call(
        projection_head_kernel,
        out_shape=jax.ShapeDtypeStruct((b_pad, HIDDEN), out_dtype),
        grid_spec=pltpu.PrefetchScalarGridSpec(
            num_scalar_prefetch=0,
            grid=grid,
            in_specs=[
                pl.BlockSpec((tm_eff, D), lambda i: (i, 0)),  # x row tile
                const2d(w1),                                  # projection W
                const2d(b1),                                  # projection b
                const2d(w2),                                  # fc W
                const2d(b2),                                  # fc b
                const2d(gamma),                               # LN gamma
                const2d(beta),                                # LN beta
            ],
            out_specs=pl.BlockSpec((tm_eff, HIDDEN), lambda i: (i, 0)),
        ),
        compiler_params=pltpu.CompilerParams(
            dimension_semantics=("parallel",),
            vmem_limit_bytes=vmem_limit,
        ),
        cost_estimate=cost,
    )(x, w1, b1, w2, b2, gamma, beta)
    return out[:B]


def reference(x, w1, b1, w2, b2, gamma, beta):
    x = x.astype(jnp.float32)
    projected = jnp.dot(x, w1.astype(jnp.float32),
                        preferred_element_type=jnp.float32) + b1
    h = jax.nn.gelu(projected, approximate=False)
    y = jnp.dot(h, w2.astype(jnp.float32),
                preferred_element_type=jnp.float32) + b2
    y = y + projected
    mean = jnp.mean(y, axis=-1, keepdims=True)
    var = jnp.mean((y - mean) ** 2, axis=-1, keepdims=True)
    return (y - mean) / jnp.sqrt(var + LN_EPS) * gamma + beta


if __name__ == "__main__":
    key = jax.random.PRNGKey(0)
    k_x, k_w1, k_b1, k_w2, k_b2 = jax.random.split(key, 5)

    B, D = 8, 64  # small: batch of 8 embeddings of dim 64

    # bf16 activations + matmul weights (MXU-native path), f32 bias/LN params.
    x = jax.random.normal(k_x, (B, D), dtype=jnp.float32).astype(jnp.bfloat16)
    w1 = (jax.random.normal(k_w1, (D, HIDDEN), jnp.float32) * 0.02
          ).astype(jnp.bfloat16)
    b1 = jax.random.normal(k_b1, (1, HIDDEN), jnp.float32) * 0.01
    w2 = (jax.random.normal(k_w2, (HIDDEN, HIDDEN), jnp.float32) * 0.02
          ).astype(jnp.bfloat16)
    b2 = jax.random.normal(k_b2, (1, HIDDEN), jnp.float32) * 0.01
    gamma = jnp.ones((1, HIDDEN), jnp.float32)
    beta = jnp.zeros((1, HIDDEN), jnp.float32)

    out = projection_head(x, w1, b1, w2, b2, gamma, beta)
    out = jax.block_until_ready(out)

    ref = reference(x, w1, b1, w2, b2, gamma, beta)
    assert out.shape == (B, HIDDEN)
    err = float(jnp.max(jnp.abs(out.astype(jnp.float32) - ref)))
    assert err < 5e-2, f"max abs err {err}"

    print("KERNEL_OK")
</pallas_src>

<mosaic_0001>
module attributes {stable_mosaic.version = 11 : i64} {
  func.func @projection_head_kernel(%arg0: i32, %arg1: memref<16x64xbf16, #tpu.memory_space<vmem>>, %arg2: memref<64x256xbf16, #tpu.memory_space<vmem>>, %arg3: memref<1x256xf32, #tpu.memory_space<vmem>>, %arg4: memref<256x256xbf16, #tpu.memory_space<vmem>>, %arg5: memref<1x256xf32, #tpu.memory_space<vmem>>, %arg6: memref<1x256xf32, #tpu.memory_space<vmem>>, %arg7: memref<1x256xf32, #tpu.memory_space<vmem>>, %arg8: memref<16x256xbf16, #tpu.memory_space<vmem>>) attributes {dimension_semantics = [#tpu.dimension_semantics<parallel>], iteration_bounds = array<i64: 1>, scalar_prefetch = 0 : i64, scratch_operands = 0 : i64, tpu.core_type = #tpu.core_type<tc>, window_params = [{transform_indices = @transform_0, window_bounds = array<i64: 16, 64>}, {pipeline_mode = #tpu.pipeline_mode<synchronous>, transform_indices = @transform_1, window_bounds = array<i64: 64, 256>}, {pipeline_mode = #tpu.pipeline_mode<synchronous>, transform_indices = @transform_2, window_bounds = array<i64: 1, 256>}, {pipeline_mode = #tpu.pipeline_mode<synchronous>, transform_indices = @transform_3, window_bounds = array<i64: 256, 256>}, {pipeline_mode = #tpu.pipeline_mode<synchronous>, transform_indices = @transform_4, window_bounds = array<i64: 1, 256>}, {pipeline_mode = #tpu.pipeline_mode<synchronous>, transform_indices = @transform_5, window_bounds = array<i64: 1, 256>}, {pipeline_mode = #tpu.pipeline_mode<synchronous>, transform_indices = @transform_6, window_bounds = array<i64: 1, 256>}, {transform_indices = @transform_7, window_bounds = array<i64: 16, 256>}]} {
    %c0 = arith.constant 0 : index
    %c0_0 = arith.constant 0 : index
    %0 = vector.load %arg1[%c0, %c0_0] : memref<16x64xbf16, #tpu.memory_space<vmem>>, vector<16x64xbf16>
    %c0_1 = arith.constant 0 : index
    %c0_2 = arith.constant 0 : index
    %1 = vector.load %arg2[%c0_1, %c0_2] : memref<64x256xbf16, #tpu.memory_space<vmem>>, vector<64x256xbf16>
    %cst = arith.constant dense<0.000000e+00> : vector<16x256xf32>
    %2 = tpu.matmul %0, %1, %cst {dimension_numbers = #tpu.dot_dimension_numbers<[1], [0], [0], [1], [0, 0, 1, 1], [], []>} : vector<16x64xbf16>, vector<64x256xbf16>, vector<16x256xf32> -> vector<16x256xf32>
    %c0_3 = arith.constant 0 : index
    %c0_4 = arith.constant 0 : index
    %3 = vector.load %arg3[%c0_3, %c0_4] : memref<1x256xf32, #tpu.memory_space<vmem>>, vector<1x256xf32>
    %4 = vector.broadcast %3 : vector<1x256xf32> to vector<16x256xf32>
    %5 = arith.addf %2, %4 : vector<16x256xf32>
    %cst_5 = arith.constant 5.000000e-01 : f32
    %6 = vector.broadcast %cst_5 : f32 to vector<16x256xf32>
    %7 = arith.mulf %6, %5 : vector<16x256xf32>
    %cst_6 = arith.constant 0.707106769 : f32
    %8 = vector.broadcast %cst_6 : f32 to vector<16x256xf32>
    %9 = arith.mulf %5, %8 : vector<16x256xf32>
    %10 = math.erf %9 : vector<16x256xf32>
    %cst_7 = arith.constant 1.000000e+00 : f32
    %11 = vector.broadcast %cst_7 : f32 to vector<16x256xf32>
    %12 = arith.addf %11, %10 : vector<16x256xf32>
    %13 = arith.mulf %7, %12 : vector<16x256xf32>
    %14 = arith.truncf %13 : vector<16x256xf32> to vector<16x256xbf16>
    %c0_8 = arith.constant 0 : index
    %c0_9 = arith.constant 0 : index
    %15 = vector.load %arg4[%c0_8, %c0_9] : memref<256x256xbf16, #tpu.memory_space<vmem>>, vector<256x256xbf16>
    %cst_10 = arith.constant dense<0.000000e+00> : vector<16x256xf32>
    %16 = tpu.matmul %14, %15, %cst_10 {dimension_numbers = #tpu.dot_dimension_numbers<[1], [0], [0], [1], [0, 0, 1, 1], [], []>} : vector<16x256xbf16>, vector<256x256xbf16>, vector<16x256xf32> -> vector<16x256xf32>
    %c0_11 = arith.constant 0 : index
    %c0_12 = arith.constant 0 : index
    %17 = vector.load %arg5[%c0_11, %c0_12] : memref<1x256xf32, #tpu.memory_space<vmem>>, vector<1x256xf32>
    %18 = vector.broadcast %17 : vector<1x256xf32> to vector<16x256xf32>
    %19 = arith.addf %16, %18 : vector<16x256xf32>
    %20 = arith.addf %19, %5 : vector<16x256xf32>
    %cst_13 = arith.constant dense<0.000000e+00> : vector<16xf32>
    %21 = vector.multi_reduction <add>, %20, %cst_13 [1] : vector<16x256xf32> to vector<16xf32>
    %22 = vector.shape_cast %21 : vector<16xf32> to vector<16x1xf32>
    %23 = arith.mulf %20, %20 : vector<16x256xf32>
    %cst_14 = arith.constant dense<0.000000e+00> : vector<16xf32>
    %24 = vector.multi_reduction <add>, %23, %cst_14 [1] : vector<16x256xf32> to vector<16xf32>
    %25 = vector.shape_cast %24 : vector<16xf32> to vector<16x1xf32>
    %cst_15 = arith.constant 3.906250e-03 : f32
    %26 = vector.broadcast %cst_15 : f32 to vector<16x1xf32>
    %27 = arith.mulf %22, %26 : vector<16x1xf32>
    %cst_16 = arith.constant 3.906250e-03 : f32
    %28 = vector.broadcast %cst_16 : f32 to vector<16x1xf32>
    %29 = arith.mulf %25, %28 : vector<16x1xf32>
    %30 = arith.mulf %27, %27 : vector<16x1xf32>
    %31 = arith.subf %29, %30 : vector<16x1xf32>
    %32 = vector.broadcast %27 : vector<16x1xf32> to vector<16x256xf32>
    %33 = arith.subf %20, %32 : vector<16x256xf32>
    %cst_17 = arith.constant 9.99999974E-6 : f32
    %34 = vector.broadcast %cst_17 : f32 to vector<16x1xf32>
    %35 = arith.addf %31, %34 : vector<16x1xf32>
    %36 = math.rsqrt %35 : vector<16x1xf32>
    %37 = vector.broadcast %36 : vector<16x1xf32> to vector<16x256xf32>
    %38 = arith.mulf %33, %37 : vector<16x256xf32>
    %c0_18 = arith.constant 0 : index
    %c0_19 = arith.constant 0 : index
    %39 = vector.load %arg6[%c0_18, %c0_19] : memref<1x256xf32, #tpu.memory_space<vmem>>, vector<1x256xf32>
    %40 = vector.broadcast %39 : vector<1x256xf32> to vector<16x256xf32>
    %41 = arith.mulf %38, %40 : vector<16x256xf32>
    %c0_20 = arith.constant 0 : index
    %c0_21 = arith.constant 0 : index
    %42 = vector.load %arg7[%c0_20, %c0_21] : memref<1x256xf32, #tpu.memory_space<vmem>>, vector<1x256xf32>
    %43 = vector.broadcast %42 : vector<1x256xf32> to vector<16x256xf32>
    %44 = arith.addf %41, %43 : vector<16x256xf32>
    %45 = arith.truncf %44 : vector<16x256xf32> to vector<16x256xbf16>
    %c0_22 = arith.constant 0 : index
    %c0_23 = arith.constant 0 : index
    %46 = vector.load %arg8[%c0_22, %c0_23] : memref<16x256xbf16, #tpu.memory_space<vmem>>, vector<16x256xbf16>
    tpu.vector_store %arg8[%c0_22, %c0_23], %45 {strides = array<i32>} : memref<16x256xbf16, #tpu.memory_space<vmem>>, vector<16x256xbf16>,
    return
  }
  func.func @transform_0(%arg0: i32) -> (i32, i32) {
    %c0_i32 = arith.constant 0 : i32
    %c0_i32_0 = arith.constant 0 : i32
    return %arg0, %c0_i32 : i32, i32
  }
  func.func @transform_1(%arg0: i32) -> (i32, i32) {
    %c0_i32 = arith.constant 0 : i32
    %c0_i32_0 = arith.constant 0 : i32
    %c0_i32_1 = arith.constant 0 : i32
    return %c0_i32, %c0_i32_0 : i32, i32
  }
  func.func @transform_2(%arg0: i32) -> (i32, i32) {
    %c0_i32 = arith.constant 0 : i32
    %c0_i32_0 = arith.constant 0 : i32
    %c0_i32_1 = arith.constant 0 : i32
    return %c0_i32, %c0_i32_0 : i32, i32
  }
  func.func @transform_3(%arg0: i32) -> (i32, i32) {
    %c0_i32 = arith.constant 0 : i32
    %c0_i32_0 = arith.constant 0 : i32
    %c0_i32_1 = arith.constant 0 : i32
    return %c0_i32, %c0_i32_0 : i32, i32
  }
  func.func @transform_4(%arg0: i32) -> (i32, i32) {
    %c0_i32 = arith.constant 0 : i32
    %c0_i32_0 = arith.constant 0 : i32
    %c0_i32_1 = arith.constant 0 : i32
    return %c0_i32, %c0_i32_0 : i32, i32
  }
  func.func @transform_5(%arg0: i32) -> (i32, i32) {
    %c0_i32 = arith.constant 0 : i32
    %c0_i32_0 = arith.constant 0 : i32
    %c0_i32_1 = arith.constant 0 : i32
    return %c0_i32, %c0_i32_0 : i32, i32
  }
  func.func @transform_6(%arg0: i32) -> (i32, i32) {
    %c0_i32 = arith.constant 0 : i32
    %c0_i32_0 = arith.constant 0 : i32
    %c0_i32_1 = arith.constant 0 : i32
    return %c0_i32, %c0_i32_0 : i32, i32
  }
  func.func @transform_7(%arg0: i32) -> (i32, i32) {
    %c0_i32 = arith.constant 0 : i32
    %c0_i32_0 = arith.constant 0 : i32
    return %arg0, %c0_i32 : i32, i32
  }
}

</mosaic_0001>

<llo_original>
// kernel: tpu_custom_call.1
$region0: #{tpu_custom_call.1}
  #allocation0 [shape = 'u32[]', space=smem, size = 0x4, offset = 0x4, fixed_abs, tag = 'smem constant byte address 0x4 - core index']
  #allocation1 [shape = 'u32[72,128]{1,0:T(1,128)}', space=vmem, size = 0x9000, scoped, tag = 'internal scratch']
  %s0 = inlined_call_operand.hbm [shape: bf16[16,64], index: 0, kind: input, shape index: {}]
  %s1 = inlined_call_operand.hbm [shape: bf16[64,256], index: 1, kind: input, shape index: {}]
  %s2 = inlined_call_operand.hbm [shape: f32[1,256], index: 2, kind: input, shape index: {}]
  %s3 = inlined_call_operand.hbm [shape: bf16[256,256], index: 3, kind: input, shape index: {}]
  %s4 = inlined_call_operand.vmem [shape: f32[1,256], index: 4, kind: input, shape index: {}]
  %s5 = inlined_call_operand.vmem [shape: f32[1,256], index: 5, kind: input, shape index: {}]
  %s6 = inlined_call_operand.hbm [shape: f32[1,256], index: 6, kind: input, shape index: {}]
  %s7 = inlined_call_operand.hbm [shape: bf16[16,256], index: 7, kind: output, shape index: {}]
  %s8 = sld [smem:[#allocation0]]
  $region58: #{tpu_custom_call.1} parent=0
    _
  %s10 = ssub.s32 1, %s8
  %s11 = scalar_select 0, %s10, %s8
  $region1: #{tpu_custom_call.1} parent=0
    #allocation2 [shape = 'u8[4096]{0}', space=vmem, size = 0x1000, scoped, tag = 'input window, operand 0, single buffered']
    #allocation3 [shape = 's32[1]{0}', space=sflag, size = 0x4, scoped, tag = 'scoped memory for tpu_custom_call.1']
    #allocation4 [shape = 's32[1]{0}', space=sflag, size = 0x4, scoped, tag = 'scoped memory for tpu_custom_call.1']
    #allocation5 [shape = 'u8[32768]{0}', space=vmem, size = 0x8000, scoped, tag = 'input window, operand 1, single buffered']
    #allocation6 [shape = 's32[1]{0}', space=sflag, size = 0x4, scoped, tag = 'scoped memory for tpu_custom_call.1']
    #allocation7 [shape = 'u8[1024]{0}', space=vmem, size = 0x400, scoped, tag = 'input window, operand 2, single buffered']
    #allocation8 [shape = 'u8[131072]{0}', space=vmem, size = 0x20000, scoped, tag = 'input window, operand 3, single buffered']
    #allocation9 [shape = 's32[1]{0}', space=sflag, size = 0x4, scoped, tag = 'scoped memory for tpu_custom_call.1']
    #allocation10 [shape = 'u8[1024]{0}', space=vmem, size = 0x400, scoped, tag = 'input window, operand 6, single buffered']
    #allocation11 [shape = 'u8[8192]{0}', space=vmem, size = 0x2000, scoped, tag = 'output window, operand 0, single buffered']
    %12 = vsyncpa [#allocation3], 0
    %13 = vsyncpa [#allocation6], 0
    %14 = vsyncpa [#allocation9], 0
    %15 = vsyncpa [#allocation4], 0
    // Predicated region
    $region2: #{tpu_custom_call.1} parent=1 // pred_check
      _
    $region3: #{tpu_custom_call.1} parent=1 // pred_check_branch
      %17 = sbr.rel (0) target = $region5
    $region4: #{tpu_custom_call.1} parent=1 // pred_region
      %19 = vsyncadd [#allocation3], 0
      %s20 = sshll.u32 %s0, 4
      %s21 = int_to_ptr.hbm [resolvable:$true] %s20
      %s22 = sshll.u32 [#allocation2], 4
      %s23 = int_to_ptr.vmem [resolvable:$true] %s22
      %28 = dma.hbm_to_vmem [thread:$0]  %s21, 128, %s23, [#allocation3], 64, 64, 4
    $region5: #{tpu_custom_call.1} parent=1 // pred_fallthru
      _
    // Predicated region
    $region6: #{tpu_custom_call.1} parent=1 // pred_check
      _
    $region7: #{tpu_custom_call.1} parent=1 // pred_check_branch
      %30 = sbr.rel (0) target = $region9
    $region8: #{tpu_custom_call.1} parent=1 // pred_region
      %32 = vsyncadd [#allocation6], 0
      %s33 = sshll.u32 %s1, 4
      %s34 = int_to_ptr.hbm [resolvable:$true] %s33
      %s35 = sshll.u32 [#allocation5], 4
      %s36 = int_to_ptr.vmem [resolvable:$true] %s35
      %41 = dma.hbm_to_vmem [thread:$0]  %s34, 1024, %s36, [#allocation6], 128, 128, 8
    $region9: #{tpu_custom_call.1} parent=1 // pred_fallthru
      _
    // Predicated region
    $region10: #{tpu_custom_call.1} parent=1 // pred_check
      _
    $region11: #{tpu_custom_call.1} parent=1 // pred_check_branch
      %43 = sbr.rel (0) target = $region13
    $region12: #{tpu_custom_call.1} parent=1 // pred_region
      %45 = vsyncadd [#allocation6], 0
      %s47 = sshll.u32 %s2, 4
      %s48 = int_to_ptr.hbm [resolvable:$true] %s47
      %s49 = sshll.u32 [#allocation7], 4
      %s50 = int_to_ptr.vmem [resolvable:$true] %s49
      %52 = dma.hbm_to_vmem [thread:$0]  %s48, 32, %s50, [#allocation6]
    $region13: #{tpu_custom_call.1} parent=1 // pred_fallthru
      _
    // Predicated region
    $region14: #{tpu_custom_call.1} parent=1 // pred_check
      _
    $region15: #{tpu_custom_call.1} parent=1 // pred_check_branch
      %54 = sbr.rel (0) target = $region17
    $region16: #{tpu_custom_call.1} parent=1 // pred_region
      %56 = vsyncadd [#allocation9], 0
      %s57 = sshll.u32 %s3, 4
      %s58 = int_to_ptr.hbm [resolvable:$true] %s57
      %s59 = sshll.u32 [#allocation8], 4
      %s60 = int_to_ptr.vmem [resolvable:$true] %s59
      %65 = dma.hbm_to_vmem [thread:$0]  %s58, 4096, %s60, [#allocation9], 128, 128, 8
    $region17: #{tpu_custom_call.1} parent=1 // pred_fallthru
      _
    // Predicated region
    $region18: #{tpu_custom_call.1} parent=1 // pred_check
      _
    $region19: #{tpu_custom_call.1} parent=1 // pred_check_branch
      %67 = sbr.rel (0) target = $region21
    $region20: #{tpu_custom_call.1} parent=1 // pred_region
      _
    $region21: #{tpu_custom_call.1} parent=1 // pred_fallthru
      _
    // Predicated region
    $region22: #{tpu_custom_call.1} parent=1 // pred_check
      _
    $region23: #{tpu_custom_call.1} parent=1 // pred_check_branch
      %69 = sbr.rel (0) target = $region25
    $region24: #{tpu_custom_call.1} parent=1 // pred_region
      _
    $region25: #{tpu_custom_call.1} parent=1 // pred_fallthru
      _
    // Predicated region
    $region26: #{tpu_custom_call.1} parent=1 // pred_check
      _
    $region27: #{tpu_custom_call.1} parent=1 // pred_check_branch
      %71 = sbr.rel (0) target = $region29
    $region28: #{tpu_custom_call.1} parent=1 // pred_region
      %73 = vsyncadd [#allocation9], 0
      %s75 = sshll.u32 %s6, 4
      %s76 = int_to_ptr.hbm [resolvable:$true] %s75
      %s77 = sshll.u32 [#allocation10], 4
      %s78 = int_to_ptr.vmem [resolvable:$true] %s77
      %80 = dma.hbm_to_vmem [thread:$0]  %s76, 32, %s78, [#allocation9]
    $region29: #{tpu_custom_call.1} parent=1 // pred_fallthru
      _
    // Predicated region
    $region30: #{tpu_custom_call.1} parent=1 // pred_check
      _
    $region31: #{tpu_custom_call.1} parent=1 // pred_check_branch
      %82 = sbr.rel (0) target = $region33
    $region32: #{tpu_custom_call.1} parent=1 // pred_region
      %84 = dma.done [#allocation3], 128
    $region33: #{tpu_custom_call.1} parent=1 // pred_fallthru
      _
    // Predicated region
    $region34: #{tpu_custom_call.1} parent=1 // pred_check
      _
    $region35: #{tpu_custom_call.1} parent=1 // pred_check_branch
      %86 = sbr.rel (0) target = $region37
    $region36: #{tpu_custom_call.1} parent=1 // pred_region
      %88 = dma.done [#allocation6], 1024
    $region37: #{tpu_custom_call.1} parent=1 // pred_fallthru
      _
    // Predicated region
    $region38: #{tpu_custom_call.1} parent=1 // pred_check
      _
    $region39: #{tpu_custom_call.1} parent=1 // pred_check_branch
      %90 = sbr.rel (0) target = $region41
    $region40: #{tpu_custom_call.1} parent=1 // pred_region
      %92 = dma.done [#allocation6], 32
    $region41: #{tpu_custom_call.1} parent=1 // pred_fallthru
      _
    // Predicated region
    $region42: #{tpu_custom_call.1} parent=1 // pred_check
      _
    $region43: #{tpu_custom_call.1} parent=1 // pred_check_branch
      %94 = sbr.rel (0) target = $region45
    $region44: #{tpu_custom_call.1} parent=1 // pred_region
      %96 = dma.done [#allocation9], 4096
    $region45: #{tpu_custom_call.1} parent=1 // pred_fallthru
      _
    // Predicated region
    $region46: #{tpu_custom_call.1} parent=1 // pred_check
      _
    $region47: #{tpu_custom_call.1} parent=1 // pred_check_branch
      %98 = sbr.rel (0) target = $region49
    $region48: #{tpu_custom_call.1} parent=1 // pred_region
      %100 = dma.done [#allocation9], 32
    $region49: #{tpu_custom_call.1} parent=1 // pred_fallthru
      _
    %v102 = vld [vmem:[#allocation2] sm:$0xf]
    %v103 = vld [vmem:[#allocation2 + $0x4] sm:$0xf]
    %v104 = vld [vmem:[#allocation5] sm:$0xff]
    %v105 = vld [vmem:[#allocation5 + $0x8] sm:$0xff]
    %v106 = vld [vmem:[#allocation5 + $0x10] sm:$0xff]
    %v107 = vld [vmem:[#allocation5 + $0x18] sm:$0xff]
    %v108 = vld [vmem:[#allocation5 + $0x20] sm:$0xff]
    %v109 = vld [vmem:[#allocation5 + $0x28] sm:$0xff]
    %v110 = vld [vmem:[#allocation5 + $0x30] sm:$0xff]
    %v111 = vld [vmem:[#allocation5 + $0x38] sm:$0xff]
    %v112 = vld [vmem:[#allocation7] sm:$0x3]
    %v114 = vperm.slane %v112, 0
    %v115 = vperm.slane %v112, 1
    %v120 = vunpack.c.l.b16 %v102
    %v121 = vunpack.c.l.b16 %v103
    %v122 = vpack.c.b16 %v121, %v120
    %v131 = vunpack.c.l.b16 %v104
    %v132 = vunpack.c.h.b16 %v104
    %v133 = vunpack.c.l.b16 %v105
    %v134 = vunpack.c.h.b16 %v105
    %v135 = vunpack.c.l.b16 %v106
    %v136 = vunpack.c.h.b16 %v106
    %v137 = vunpack.c.l.b16 %v107
    %v138 = vunpack.c.h.b16 %v107
    %v139 = vunpack.c.l.b16 %v108
    %v140 = vunpack.c.h.b16 %v108
    %v141 = vunpack.c.l.b16 %v109
    %v142 = vunpack.c.h.b16 %v109
    %v143 = vunpack.c.l.b16 %v110
    %v144 = vunpack.c.h.b16 %v110
    %v145 = vunpack.c.l.b16 %v111
    %v146 = vunpack.c.h.b16 %v111
    %v147 = vpack.c.b16 %v133, %v131
    %v148 = vpack.c.b16 %v134, %v132
    %v149 = vpack.c.b16 %v137, %v135
    %v150 = vpack.c.b16 %v138, %v136
    %v151 = vpack.c.b16 %v141, %v139
    %v152 = vpack.c.b16 %v142, %v140
    %v153 = vpack.c.b16 %v145, %v143
    %v154 = vpack.c.b16 %v146, %v144
    %vm163 = vcmask 523264
    %v165 = vsel %vm163, %v122, 0
    %167 = vmatpush.bf16.msra.mxu0 0
    %168 = vmatpush.bf16.msra.mxu0 0
    %169 = vmatpush.bf16.msra.mxu0 0
    %170 = vmatpush.bf16.msra.mxu0 0
    %171 = vmatpush.bf16.msra.mxu0 %v153
    %172 = vmatpush.bf16.msra.mxu0 %v151
    %173 = vmatpush.bf16.msra.mxu0 %v149
    %174 = vmatpush.bf16.msra.mxu0 %v147
    %175 = vmatmul.bf16.gmra.mxu0 %v165
    %v176 = vpop.f32.mrf.mxu0
    %v177 = vadd.f32 %v114, %v176
    %v178 = vpop.f32.mrf.mxu0
    %v179 = vadd.f32 %v114, %v178
    %180 = vdwg.mxu0
    %181 = vmatpush.bf16.msra.mxu0 0
    %182 = vmatpush.bf16.msra.mxu0 0
    %183 = vmatpush.bf16.msra.mxu0 0
    %184 = vmatpush.bf16.msra.mxu0 0
    %185 = vmatpush.bf16.msra.mxu0 %v154
    %186 = vmatpush.bf16.msra.mxu0 %v152
    %187 = vmatpush.bf16.msra.mxu0 %v150
    %188 = vmatpush.bf16.msra.mxu0 %v148
    %189 = vmatmul.bf16.gmra.mxu0 %v165
    %v190 = vpop.f32.mrf.mxu0
    %v191 = vadd.f32 %v115, %v190
    %v192 = vpop.f32.mrf.mxu0
    %v193 = vadd.f32 %v115, %v192
    %194 = vdwg.mxu0
    %v195 = vmul.f32 %v177, 0.5
    %v196 = vmul.f32 %v191, 0.5
    %v197 = vmul.f32 %v179, 0.5
    %v198 = vmul.f32 %v193, 0.5
    %v199 = vmul.f32 %v177, 0.70710677
    %v200 = vmul.f32 %v191, 0.70710677
    %v201 = vmul.f32 %v179, 0.70710677
    %v202 = vmul.f32 %v193, 0.70710677
    %v203 = vmul.f32 %v199, %v199
    %v204 = vmin.f32 16.0, %v203
    %v205 = vmul.f32 %v204, 2.1237322e-06
    %v206 = vadd.f32 %v205, 0.00028619796
    %v207 = vmul.f32 %v204, %v206
    %v208 = vadd.f32 %v207, 0.0036580483
    %v209 = vmul.f32 %v204, %v208
    %v210 = vadd.f32 %v209, 0.05243302
    %v211 = vmul.f32 %v204, %v210
    %v212 = vadd.f32 %v211, 0.18741608
    %v213 = vmul.f32 %v204, %v212
    %v214 = vadd.f32 %v213, 1.1283791
    %v215 = vmul.f32 %v199, %v214
    %v216 = vmul.f32 %v204, 3.8918573e-05
    %v217 = vadd.f32 %v216, 0.001143296
    %v218 = vmul.f32 %v204, %v217
    %v219 = vadd.f32 %v218, 0.014752088
    %v220 = vmul.f32 %v204, %v219
    %v221 = vadd.f32 %v220, 0.112945676
    %v222 = vmul.f32 %v204, %v221
    %v223 = vadd.f32 %v222, 0.4994258
    %v224 = vmul.f32 %v204, %v223
    %v225 = vadd.f32 %v224, 1.0
    %v226 = vrcp.pop %v225
    %v227 = vmul.f32 %v225, %v226
    %v228 = vsub.f32 1.0, %v227
    %v229 = vmul.f32 %v226, %v228
    %v230 = vadd.f32 %v226, %v229
    %vm231 = vweird.f32 %v225
    %vm232 = vweird.f32 %v226
    %vm233 = vmor %vm231, %vm232
    %v234 = vsel %vm233, %v226, %v230
    %v235 = vand.u32 2147483647, %v225
    %vm236 = vcmp.eq.f32.partialorder %v235, 8.507059e+37
    %v237 = vand.u32 %v225, 2147483648
    %v238 = vor.u32 1.1754944e-38, %v237
    %v239 = vsel %vm236, %v238, %v234
    %v240 = vmul.f32 %v215, %v239
    %v241 = vmin.f32 %v240, 1.0
    %v242 = vmax.f32 %v241, -1.0
    %v243 = vmul.f32 %v200, %v200
    %v244 = vmin.f32 16.0, %v243
    %v245 = vmul.f32 %v244, 2.1237322e-06
    %v246 = vadd.f32 %v245, 0.00028619796
    %v247 = vmul.f32 %v244, %v246
    %v248 = vadd.f32 %v247, 0.0036580483
    %v249 = vmul.f32 %v244, %v248
    %v250 = vadd.f32 %v249, 0.05243302
    %v251 = vmul.f32 %v244, %v250
    %v252 = vadd.f32 %v251, 0.18741608
    %v253 = vmul.f32 %v244, %v252
    %v254 = vadd.f32 %v253, 1.1283791
    %v255 = vmul.f32 %v200, %v254
    %v256 = vmul.f32 %v244, 3.8918573e-05
    %v257 = vadd.f32 %v256, 0.001143296
    %v258 = vmul.f32 %v244, %v257
    %v259 = vadd.f32 %v258, 0.014752088
    %v260 = vmul.f32 %v244, %v259
    %v261 = vadd.f32 %v260, 0.112945676
    %v262 = vmul.f32 %v244, %v261
    %v263 = vadd.f32 %v262, 0.4994258
    %v264 = vmul.f32 %v244, %v263
    %v265 = vadd.f32 %v264, 1.0
    %v266 = vrcp.pop %v265
    %v267 = vmul.f32 %v265, %v266
    %v268 = vsub.f32 1.0, %v267
    %v269 = vmul.f32 %v266, %v268
    %v270 = vadd.f32 %v266, %v269
    %vm271 = vweird.f32 %v265
    %vm272 = vweird.f32 %v266
    %vm273 = vmor %vm271, %vm272
    %v274 = vsel %vm273, %v266, %v270
    %v275 = vand.u32 2147483647, %v265
    %vm276 = vcmp.eq.f32.partialorder %v275, 8.507059e+37
    %v277 = vand.u32 %v265, 2147483648
    %v278 = vor.u32 1.1754944e-38, %v277
    %v279 = vsel %vm276, %v278, %v274
    %v280 = vmul.f32 %v255, %v279
    %v281 = vmin.f32 %v280, 1.0
    %v282 = vmax.f32 %v281, -1.0
    %v283 = vmul.f32 %v201, %v201
    %v284 = vmin.f32 16.0, %v283
    %v285 = vmul.f32 %v284, 2.1237322e-06
    %v286 = vadd.f32 %v285, 0.00028619796
    %v287 = vmul.f32 %v284, %v286
    %v288 = vadd.f32 %v287, 0.0036580483
    %v289 = vmul.f32 %v284, %v288
    %v290 = vadd.f32 %v289, 0.05243302
    %v291 = vmul.f32 %v284, %v290
    %v292 = vadd.f32 %v291, 0.18741608
    %v293 = vmul.f32 %v284, %v292
    %v294 = vadd.f32 %v293, 1.1283791
    %v295 = vmul.f32 %v201, %v294
    %v296 = vmul.f32 %v284, 3.8918573e-05
    %v297 = vadd.f32 %v296, 0.001143296
    %v298 = vmul.f32 %v284, %v297
    %v299 = vadd.f32 %v298, 0.014752088
    %v300 = vmul.f32 %v284, %v299
    %v301 = vadd.f32 %v300, 0.112945676
    %v302 = vmul.f32 %v284, %v301
    %v303 = vadd.f32 %v302, 0.4994258
    %v304 = vmul.f32 %v284, %v303
    %v305 = vadd.f32 %v304, 1.0
    %v306 = vrcp.pop %v305
    %v307 = vmul.f32 %v305, %v306
    %v308 = vsub.f32 1.0, %v307
    %v309 = vmul.f32 %v306, %v308
    %v310 = vadd.f32 %v306, %v309
    %vm311 = vweird.f32 %v305
    %vm312 = vweird.f32 %v306
    %vm313 = vmor %vm311, %vm312
    %v314 = vsel %vm313, %v306, %v310
    %v315 = vand.u32 2147483647, %v305
    %vm316 = vcmp.eq.f32.partialorder %v315, 8.507059e+37
    %v317 = vand.u32 %v305, 2147483648
    %v318 = vor.u32 1.1754944e-38, %v317
    %v319 = vsel %vm316, %v318, %v314
    %v320 = vmul.f32 %v295, %v319
    %v321 = vmin.f32 %v320, 1.0
    %v322 = vmax.f32 %v321, -1.0
    %v323 = vmul.f32 %v202, %v202
    %v324 = vmin.f32 16.0, %v323
    %v325 = vmul.f32 %v324, 2.1237322e-06
    %v326 = vadd.f32 %v325, 0.00028619796
    %v327 = vmul.f32 %v324, %v326
    %v328 = vadd.f32 %v327, 0.0036580483
    %v329 = vmul.f32 %v324, %v328
    %v330 = vadd.f32 %v329, 0.05243302
    %v331 = vmul.f32 %v324, %v330
    %v332 = vadd.f32 %v331, 0.18741608
    %v333 = vmul.f32 %v324, %v332
    %v334 = vadd.f32 %v333, 1.1283791
    %v335 = vmul.f32 %v202, %v334
    %v336 = vmul.f32 %v324, 3.8918573e-05
    %v337 = vadd.f32 %v336, 0.001143296
    %v338 = vmul.f32 %v324, %v337
    %v339 = vadd.f32 %v338, 0.014752088
    %v340 = vmul.f32 %v324, %v339
    %v341 = vadd.f32 %v340, 0.112945676
    %v342 = vmul.f32 %v324, %v341
    %v343 = vadd.f32 %v342, 0.4994258
    %v344 = vmul.f32 %v324, %v343
    %v345 = vadd.f32 %v344, 1.0
    %v346 = vrcp.pop %v345
    %v347 = vmul.f32 %v345, %v346
    %v348 = vsub.f32 1.0, %v347
    %v349 = vmul.f32 %v346, %v348
    %v350 = vadd.f32 %v346, %v349
    %vm351 = vweird.f32 %v345
    %vm352 = vweird.f32 %v346
    %vm353 = vmor %vm351, %vm352
    %v354 = vsel %vm353, %v346, %v350
    %v355 = vand.u32 2147483647, %v345
    %vm356 = vcmp.eq.f32.partialorder %v355, 8.507059e+37
    %v357 = vand.u32 %v345, 2147483648
    %v358 = vor.u32 1.1754944e-38, %v357
    %v359 = vsel %vm356, %v358, %v354
    %v360 = vmul.f32 %v335, %v359
    %v361 = vmin.f32 %v360, 1.0
    %v362 = vmax.f32 %v361, -1.0
    %v363 = vadd.f32 %v242, 1.0
    %v364 = vadd.f32 %v282, 1.0
    %v365 = vadd.f32 %v322, 1.0
    %v366 = vadd.f32 %v362, 1.0
    %v367 = vmul.f32 %v195, %v363
    %v368 = vmul.f32 %v196, %v364
    %v369 = vmul.f32 %v197, %v365
    %v370 = vmul.f32 %v198, %v366
    %v371 = vpack.c.bf16 %v369, %v367
    %v372 = vpack.c.bf16 %v370, %v368
    %v373 = vld [vmem:[#allocation8] sm:$0xff]
    %v374 = vld [vmem:[#allocation8 + $0x8] sm:$0xff]
    %v375 = vld [vmem:[#allocation8 + $0x10] sm:$0xff]
    %v376 = vld [vmem:[#allocation8 + $0x18] sm:$0xff]
    %v377 = vld [vmem:[#allocation8 + $0x20] sm:$0xff]
    %v378 = vld [vmem:[#allocation8 + $0x28] sm:$0xff]
    %v379 = vld [vmem:[#allocation8 + $0x30] sm:$0xff]
    %v380 = vld [vmem:[#allocation8 + $0x38] sm:$0xff]
    %v381 = vld [vmem:[#allocation8 + $0x40] sm:$0xff]
    %v382 = vld [vmem:[#allocation8 + $0x48] sm:$0xff]
    %v383 = vld [vmem:[#allocation8 + $0x50] sm:$0xff]
    %v384 = vld [vmem:[#allocation8 + $0x58] sm:$0xff]
    %v385 = vld [vmem:[#allocation8 + $0x60] sm:$0xff]
    %v386 = vld [vmem:[#allocation8 + $0x68] sm:$0xff]
    %v387 = vld [vmem:[#allocation8 + $0x70] sm:$0xff]
    %v388 = vld [vmem:[#allocation8 + $0x78] sm:$0xff]
    %v389 = vld [vmem:[#allocation8 + $0x80] sm:$0xff]
    %v390 = vld [vmem:[#allocation8 + $0x88] sm:$0xff]
    %v391 = vld [vmem:[#allocation8 + $0x90] sm:$0xff]
    %v392 = vld [vmem:[#allocation8 + $0x98] sm:$0xff]
    %v393 = vld [vmem:[#allocation8 + $0xa0] sm:$0xff]
    %v394 = vld [vmem:[#allocation8 + $0xa8] sm:$0xff]
    %v395 = vld [vmem:[#allocation8 + $0xb0] sm:$0xff]
    %v396 = vld [vmem:[#allocation8 + $0xb8] sm:$0xff]
    %v397 = vld [vmem:[#allocation8 + $0xc0] sm:$0xff]
    %v398 = vld [vmem:[#allocation8 + $0xc8] sm:$0xff]
    %v399 = vld [vmem:[#allocation8 + $0xd0] sm:$0xff]
    %v400 = vld [vmem:[#allocation8 + $0xd8] sm:$0xff]
    %v401 = vld [vmem:[#allocation8 + $0xe0] sm:$0xff]
    %v402 = vld [vmem:[#allocation8 + $0xe8] sm:$0xff]
    %v403 = vld [vmem:[#allocation8 + $0xf0] sm:$0xff]
    %v404 = vld [vmem:[#allocation8 + $0xf8] sm:$0xff]
    %v405 = vld [vmem:[%s4] sm:$0x3]
    %v407 = vperm.slane %v405, 0
    %v408 = vperm.slane %v405, 1
    %v443 = vunpack.c.l.b16 %v373
    %v444 = vunpack.c.h.b16 %v373
    %v445 = vunpack.c.l.b16 %v374
    %v446 = vunpack.c.h.b16 %v374
    %v447 = vunpack.c.l.b16 %v375
    %v448 = vunpack.c.h.b16 %v375
    %v449 = vunpack.c.l.b16 %v376
    %v450 = vunpack.c.h.b16 %v376
    %v451 = vunpack.c.l.b16 %v377
    %v452 = vunpack.c.h.b16 %v377
    %v453 = vunpack.c.l.b16 %v378
    %v454 = vunpack.c.h.b16 %v378
    %v455 = vunpack.c.l.b16 %v379
    %v456 = vunpack.c.h.b16 %v379
    %v457 = vunpack.c.l.b16 %v380
    %v458 = vunpack.c.h.b16 %v380
    %v459 = vunpack.c.l.b16 %v381
    %v460 = vunpack.c.h.b16 %v381
    %v461 = vunpack.c.l.b16 %v382
    %v462 = vunpack.c.h.b16 %v382
    %v463 = vunpack.c.l.b16 %v383
    %v464 = vunpack.c.h.b16 %v383
    %v465 = vunpack.c.l.b16 %v384
    %v466 = vunpack.c.h.b16 %v384
    %v467 = vunpack.c.l.b16 %v385
    %v468 = vunpack.c.h.b16 %v385
    %v469 = vunpack.c.l.b16 %v386
    %v470 = vunpack.c.h.b16 %v386
    %v471 = vunpack.c.l.b16 %v387
    %v472 = vunpack.c.h.b16 %v387
    %v473 = vunpack.c.l.b16 %v388
    %v474 = vunpack.c.h.b16 %v388
    %v475 = vunpack.c.l.b16 %v389
    %v476 = vunpack.c.h.b16 %v389
    %v477 = vunpack.c.l.b16 %v390
    %v478 = vunpack.c.h.b16 %v390
    %v479 = vunpack.c.l.b16 %v391
    %v480 = vunpack.c.h.b16 %v391
    %v481 = vunpack.c.l.b16 %v392
    %v482 = vunpack.c.h.b16 %v392
    %v483 = vunpack.c.l.b16 %v393
    %v484 = vunpack.c.h.b16 %v393
    %v485 = vunpack.c.l.b16 %v394
    %v486 = vunpack.c.h.b16 %v394
    %v487 = vunpack.c.l.b16 %v395
    %v488 = vunpack.c.h.b16 %v395
    %v489 = vunpack.c.l.b16 %v396
    %v490 = vunpack.c.h.b16 %v396
    %v491 = vunpack.c.l.b16 %v397
    %v492 = vunpack.c.h.b16 %v397
    %v493 = vunpack.c.l.b16 %v398
    %v494 = vunpack.c.h.b16 %v398
    %v495 = vunpack.c.l.b16 %v399
    %v496 = vunpack.c.h.b16 %v399
    %v497 = vunpack.c.l.b16 %v400
    %v498 = vunpack.c.h.b16 %v400
    %v499 = vunpack.c.l.b16 %v401
    %v500 = vunpack.c.h.b16 %v401
    %v501 = vunpack.c.l.b16 %v402
    %v502 = vunpack.c.h.b16 %v402
    %v503 = vunpack.c.l.b16 %v403
    %v504 = vunpack.c.h.b16 %v403
    %v505 = vunpack.c.l.b16 %v404
    %v506 = vunpack.c.h.b16 %v404
    %v507 = vpack.c.b16 %v445, %v443
    %v508 = vpack.c.b16 %v446, %v444
    %v509 = vpack.c.b16 %v449, %v447
    %v510 = vpack.c.b16 %v450, %v448
    %v511 = vpack.c.b16 %v453, %v451
    %v512 = vpack.c.b16 %v454, %v452
    %v513 = vpack.c.b16 %v457, %v455
    %v514 = vpack.c.b16 %v458, %v456
    %v515 = vpack.c.b16 %v461, %v459
    %v516 = vpack.c.b16 %v462, %v460
    %v517 = vpack.c.b16 %v465, %v463
    %v518 = vpack.c.b16 %v466, %v464
    %v519 = vpack.c.b16 %v469, %v467
    %v520 = vpack.c.b16 %v470, %v468
    %v521 = vpack.c.b16 %v473, %v471
    %v522 = vpack.c.b16 %v474, %v472
    %v523 = vpack.c.b16 %v477, %v475
    %v524 = vpack.c.b16 %v478, %v476
    %v525 = vpack.c.b16 %v481, %v479
    %v526 = vpack.c.b16 %v482, %v480
    %v527 = vpack.c.b16 %v485, %v483
    %v528 = vpack.c.b16 %v486, %v484
    %v529 = vpack.c.b16 %v489, %v487
    %v530 = vpack.c.b16 %v490, %v488
    %v531 = vpack.c.b16 %v493, %v491
    %v532 = vpack.c.b16 %v494, %v492
    %v533 = vpack.c.b16 %v497, %v495
    %v534 = vpack.c.b16 %v498, %v496
    %v535 = vpack.c.b16 %v501, %v499
    %v536 = vpack.c.b16 %v502, %v500
    %v537 = vpack.c.b16 %v505, %v503
    %v538 = vpack.c.b16 %v506, %v504
    %571 = vmatpush.bf16.msra.mxu0 %v521
    %572 = vmatpush.bf16.msra.mxu0 %v519
    %573 = vmatpush.bf16.msra.mxu0 %v517
    %574 = vmatpush.bf16.msra.mxu0 %v515
    %575 = vmatpush.bf16.msra.mxu0 %v513
    %576 = vmatpush.bf16.msra.mxu0 %v511
    %577 = vmatpush.bf16.msra.mxu0 %v509
    %578 = vmatpush.bf16.msra.mxu0 %v507
    %579 = vmatmul.bf16.gmra.mxu0 %v371
    %v580 = vpop.f32.mrf.mxu0
    %v581 = vadd.f32 %v407, %v580
    %v582 = vpop.f32.mrf.mxu0
    %v583 = vadd.f32 %v407, %v582
    %584 = vdwg.mxu0
    %585 = vmatpush.bf16.msra.mxu0 %v537
    %586 = vmatpush.bf16.msra.mxu0 %v535
    %587 = vmatpush.bf16.msra.mxu0 %v533
    %588 = vmatpush.bf16.msra.mxu0 %v531
    %589 = vmatpush.bf16.msra.mxu0 %v529
    %590 = vmatpush.bf16.msra.mxu0 %v527
    %591 = vmatpush.bf16.msra.mxu0 %v525
    %592 = vmatpush.bf16.msra.mxu0 %v523
    %593 = vmatmul.bf16.gmra.mxu0 %v372
    %v594 = vpop.f32.mrf.mxu0
    %v595 = vadd.f32 %v581, %v594
    %v596 = vpop.f32.mrf.mxu0
    %v597 = vadd.f32 %v583, %v596
    %598 = vdwg.mxu0
    %599 = vmatpush.bf16.msra.mxu0 %v522
    %600 = vmatpush.bf16.msra.mxu0 %v520
    %601 = vmatpush.bf16.msra.mxu0 %v518
    %602 = vmatpush.bf16.msra.mxu0 %v516
    %603 = vmatpush.bf16.msra.mxu0 %v514
    %604 = vmatpush.bf16.msra.mxu0 %v512
    %605 = vmatpush.bf16.msra.mxu0 %v510
    %606 = vmatpush.bf16.msra.mxu0 %v508
    %607 = vmatmul.bf16.gmra.mxu0 %v371
    %v608 = vpop.f32.mrf.mxu0
    %v609 = vadd.f32 %v408, %v608
    %v610 = vpop.f32.mrf.mxu0
    %v611 = vadd.f32 %v408, %v610
    %612 = vdwg.mxu0
    %613 = vmatpush.bf16.msra.mxu0 %v538
    %614 = vmatpush.bf16.msra.mxu0 %v536
    %615 = vmatpush.bf16.msra.mxu0 %v534
    %616 = vmatpush.bf16.msra.mxu0 %v532
    %617 = vmatpush.bf16.msra.mxu0 %v530
    %618 = vmatpush.bf16.msra.mxu0 %v528
    %619 = vmatpush.bf16.msra.mxu0 %v526
    %620 = vmatpush.bf16.msra.mxu0 %v524
    %621 = vmatmul.bf16.gmra.mxu0 %v372
    %v622 = vpop.f32.mrf.mxu0
    %v623 = vadd.f32 %v609, %v622
    %v624 = vpop.f32.mrf.mxu0
    %v625 = vadd.f32 %v611, %v624
    %626 = vdwg.mxu0
    %v627 = vadd.f32 %v595, %v177
    %v628 = vadd.f32 %v623, %v191
    %v629 = vadd.f32 %v597, %v179
    %v630 = vadd.f32 %v625, %v193
    %v631 = vadd.f32 %v627, %v628
    %632 = vadd.xlane.f32.xlu0 %v631
    %v633 = vpop.xlane.xlu0 %632
    %v634 = vadd.f32 %v629, %v630
    %635 = vadd.xlane.f32.xlu0 %v634
    %v636 = vpop.xlane.xlu0 %635
    %v637 = vmul.f32 %v627, %v627
    %v638 = vmul.f32 %v628, %v628
    %v639 = vmul.f32 %v629, %v629
    %v640 = vmul.f32 %v630, %v630
    %v641 = vadd.f32 %v637, %v638
    %642 = vadd.xlane.f32.xlu0 %v641
    %v643 = vpop.xlane.xlu0 %642
    %v644 = vadd.f32 %v639, %v640
    %645 = vadd.xlane.f32.xlu0 %v644
    %v646 = vpop.xlane.xlu0 %645
    %v647 = vmul.f32 %v633, 0.00390625
    %v648 = vmul.f32 %v636, 0.00390625
    %v649 = vmul.f32 %v643, 0.00390625
    %v650 = vmul.f32 %v646, 0.00390625
    %v651 = vmul.f32 %v647, %v647
    %v652 = vmul.f32 %v648, %v648
    %v653 = vsub.f32 %v649, %v651
    %v654 = vsub.f32 %v650, %v652
    %v655 = vsub.f32 %v627, %v647
    %v656 = vsub.f32 %v628, %v647
    %v657 = vsub.f32 %v629, %v648
    %v658 = vsub.f32 %v630, %v648
    %v659 = vadd.f32 %v653, 1e-05
    %v660 = vadd.f32 %v654, 1e-05
    %v661 = vrsqrt.pop %v659
    %v662 = vmul.f32 %v661, %v659
    %v663 = vmul.f32 %v662, %v661
    %v664 = vmul.f32 0.5, %v663
    %v665 = vsub.f32 1.5, %v664
    %v666 = vmul.f32 %v661, %v665
    %vm667 = vweird.f32 %v659
    %vm668 = vweird.f32 %v661
    %vm669 = vmor %vm667, %vm668
    %v670 = vsel %vm669, %v661, %v666
    %v671 = vrsqrt.pop %v660
    %v672 = vmul.f32 %v671, %v660
    %v673 = vmul.f32 %v672, %v671
    %v674 = vmul.f32 0.5, %v673
    %v675 = vsub.f32 1.5, %v674
    %v676 = vmul.f32 %v671, %v675
    %vm677 = vweird.f32 %v660
    %vm678 = vweird.f32 %v671
    %vm679 = vmor %vm677, %vm678
    %v680 = vsel %vm679, %v671, %v676
    %v681 = vmul.f32 %v655, %v670
    %v682 = vmul.f32 %v656, %v670
    %v683 = vmul.f32 %v657, %v680
    %v684 = vmul.f32 %v658, %v680
    %v685 = vld [vmem:[%s5] sm:$0x3]
    %v687 = vperm.slane %v685, 0
    %v688 = vperm.slane %v685, 1
    %v691 = vmul.f32 %v681, %v687
    %v692 = vmul.f32 %v682, %v688
    %v693 = vmul.f32 %v683, %v687
    %v694 = vmul.f32 %v684, %v688
    %v695 = vld [vmem:[#allocation10] sm:$0x3]
    %v697 = vperm.slane %v695, 0
    %v698 = vperm.slane %v695, 1
    %v701 = vadd.f32 %v691, %v697
    %v702 = vadd.f32 %v692, %v698
    %v703 = vadd.f32 %v693, %v697
    %v704 = vadd.f32 %v694, %v698
    %v705 = vpack.c.bf16 %v702, %v701
    %v706 = vpack.c.bf16 %v704, %v703
    %707 = vst [vmem:[#allocation11] sm:$0xff] %v705
    %708 = vst [vmem:[#allocation11 + $0x8] sm:$0xff] %v706
    // Predicated region
    $region50: #{tpu_custom_call.1} parent=1 // pred_check
      _
    $region51: #{tpu_custom_call.1} parent=1 // pred_check_branch
      %710 = sbr.rel (0) target = $region53
    $region52: #{tpu_custom_call.1} parent=1 // pred_region
      %712 = vsyncadd [#allocation4], 0
      %s713 = sshll.u32 [#allocation11], 4
      %s714 = int_to_ptr.vmem [resolvable:$true] %s713
      %s715 = sshll.u32 %s7, 4
      %s716 = int_to_ptr.hbm [resolvable:$true] %s715
      %721 = dma.vmem_to_hbm [thread:$0]  %s714, 256, %s716, [#allocation4], 128, 128, 8
    $region53: #{tpu_custom_call.1} parent=1 // pred_fallthru
      _
    // Predicated region
    $region54: #{tpu_custom_call.1} parent=1 // pred_check
      _
    $region55: #{tpu_custom_call.1} parent=1 // pred_check_branch
      %723 = sbr.rel (0) target = $region57
    $region56: #{tpu_custom_call.1} parent=1 // pred_region
      %725 = dma.done [#allocation4], 256
    $region57: #{tpu_custom_call.1} parent=1 // pred_fallthru
      _
    %726 = vsyncpa [#allocation3], 1
    %727 = vsyncpa [#allocation6], 1
    %728 = vsyncpa [#allocation9], 1
    %729 = vsyncpa [#allocation4], 1

</llo_original>
